<compile_context>
chip_gen: v6e
topology: v6e:2x2x1
jax: 0.10.0
libtpu: 0.0.40
codegen_flags: <defaults>
</compile_context>

<pallas_src>
import jax
import jax.numpy as jnp
from jax.experimental import pallas as pl
from jax.experimental.pallas import tpu as pltpu

HIDDEN = 256      # fixed by nn.Linear(256, 20)
CLASSES = 20
PADDED_C = 128    # lane-dense class dim (multiple of 128)
TILE_N = 1024     # rows per grid step
NEG_BIG = -1e30   # logit value injected into padded class lanes


def _head_kernel(x_ref, w_ref, b_ref, o_ref):
    # x_ref: (tile_n, HIDDEN); w_ref: (HIDDEN, PADDED_C); b_ref: (1, PADDED_C)
    # Linear: logits = x @ W + b.  W is pre-transposed and zero-padded to 128
    # classes; padded lanes carry a -1e30 bias so exp() drives them to zero.
    logits = jnp.dot(x_ref[...], w_ref[...],
                     preferred_element_type=jnp.float32) + b_ref[...]

    # Numerically-stable softmax over the class axis (nn.Softmax -> dim=1).
    m = jnp.max(logits, axis=-1, keepdims=True)
    e = jnp.exp(logits - m)
    denom = jnp.sum(e, axis=-1, keepdims=True)
    o_ref[...] = (e * pl.reciprocal(denom, approx=True)).astype(o_ref.dtype)


def predictor_head(feat, weight, bias, *, tile_n=TILE_N):
    """feat: [N, 256]; weight: [256, 20]; bias: [20]. Returns [N, 20] f32 probs."""
    n, h = feat.shape
    assert h == HIDDEN

    # Lane-dense parameters: zero-pad weight columns; push padded logit lanes
    # to -1e30 via the bias so they vanish in the softmax denominator.
    w_pad = jnp.zeros((HIDDEN, PADDED_C), feat.dtype).at[:, :CLASSES].set(
        weight.astype(feat.dtype))
    b_pad = jnp.full((1, PADDED_C), NEG_BIG, jnp.float32).at[0, :CLASSES].set(
        bias.astype(jnp.float32))

    # Row tile: large for real-size N, shrunk (8-aligned) for tiny inputs.
    n8 = ((n + 7) // 8) * 8
    tn = min(tile_n, n8)
    n_pad = ((n + tn - 1) // tn) * tn
    if n_pad != n:
        feat = jnp.pad(feat, ((0, n_pad - n), (0, 0)))

    out = pl.pallas_call(
        _head_kernel,
        out_shape=jax.ShapeDtypeStruct((n_pad, PADDED_C), jnp.float32),
        grid_spec=pltpu.PrefetchScalarGridSpec(
            num_scalar_prefetch=0,
            grid=(n_pad // tn,),
            in_specs=[
                pl.BlockSpec((tn, HIDDEN), lambda i: (i, 0)),
                pl.BlockSpec((HIDDEN, PADDED_C), lambda i: (0, 0)),
                pl.BlockSpec((1, PADDED_C), lambda i: (0, 0)),
            ],
            out_specs=pl.BlockSpec((tn, PADDED_C), lambda i: (i, 0)),
        ),
        compiler_params=pltpu.CompilerParams(
            dimension_semantics=("parallel",)),
    )(feat, w_pad, b_pad)

    return out[:n, :CLASSES]


def reference_head(feat, weight, bias):
    logits = feat.astype(jnp.float32) @ weight.astype(jnp.float32) + bias[None, :]
    return jax.nn.softmax(logits, axis=-1)


if __name__ == "__main__":
    key = jax.random.PRNGKey(0)
    k_feat, k_w, k_b = jax.random.split(key, 3)

    # Small, ragged N (not a tile multiple) to exercise the padding path.
    N = 300
    feat = jax.random.normal(k_feat, (N, HIDDEN), dtype=jnp.float32)

    # Deterministic synthetic parameters (nn.Linear(256, 20) shapes).
    # PyTorch stores W as [20, 256]; we keep it pre-transposed as [256, 20].
    w = jax.random.normal(k_w, (HIDDEN, CLASSES), dtype=jnp.float32) * (1.0 / HIDDEN ** 0.5)
    b = jax.random.normal(k_b, (CLASSES,), dtype=jnp.float32) * 0.01

    probs = predictor_head(feat, w, b)
    probs = jax.block_until_ready(probs)

    ref = reference_head(feat, w, b)
    assert probs.shape == (N, CLASSES)
    # approx reciprocal on the EUP -> slightly looser tolerance than exact div
    assert jnp.allclose(probs, ref, atol=2e-3, rtol=2e-3)
    assert jnp.allclose(jnp.sum(probs, axis=-1), 1.0, atol=2e-3)

    print("KERNEL_OK")
</pallas_src>

<mosaic_0001>
module attributes {stable_mosaic.version = 11 : i64} {
  func.func @_head_kernel(%arg0: i32, %arg1: memref<304x256xf32, #tpu.memory_space<vmem>>, %arg2: memref<256x128xf32, #tpu.memory_space<vmem>>, %arg3: memref<1x128xf32, #tpu.memory_space<vmem>>, %arg4: memref<304x128xf32, #tpu.memory_space<vmem>>) attributes {dimension_semantics = [#tpu.dimension_semantics<parallel>], iteration_bounds = array<i64: 1>, scalar_prefetch = 0 : i64, scratch_operands = 0 : i64, tpu.core_type = #tpu.core_type<tc>, window_params = [{transform_indices = @transform_0, window_bounds = array<i64: 304, 256>}, {pipeline_mode = #tpu.pipeline_mode<synchronous>, transform_indices = @transform_1, window_bounds = array<i64: 256, 128>}, {pipeline_mode = #tpu.pipeline_mode<synchronous>, transform_indices = @transform_2, window_bounds = array<i64: 1, 128>}, {transform_indices = @transform_3, window_bounds = array<i64: 304, 128>}]} {
    %c0 = arith.constant 0 : index
    %c0_0 = arith.constant 0 : index
    %0 = vector.load %arg1[%c0, %c0_0] : memref<304x256xf32, #tpu.memory_space<vmem>>, vector<304x256xf32>
    %c0_1 = arith.constant 0 : index
    %c0_2 = arith.constant 0 : index
    %1 = vector.load %arg2[%c0_1, %c0_2] : memref<256x128xf32, #tpu.memory_space<vmem>>, vector<256x128xf32>
    %cst = arith.constant dense<0.000000e+00> : vector<304x128xf32>
    %2 = tpu.matmul %0, %1, %cst {dimension_numbers = #tpu.dot_dimension_numbers<[1], [0], [0], [1], [0, 0, 1, 1], [], []>} : vector<304x256xf32>, vector<256x128xf32>, vector<304x128xf32> -> vector<304x128xf32>
    %c0_3 = arith.constant 0 : index
    %c0_4 = arith.constant 0 : index
    %3 = vector.load %arg3[%c0_3, %c0_4] : memref<1x128xf32, #tpu.memory_space<vmem>>, vector<1x128xf32>
    %4 = vector.broadcast %3 : vector<1x128xf32> to vector<304x128xf32>
    %5 = arith.addf %2, %4 : vector<304x128xf32>
    %cst_5 = arith.constant dense<0xFF800000> : vector<304xf32>
    %6 = vector.multi_reduction <maximumf>, %5, %cst_5 [1] : vector<304x128xf32> to vector<304xf32>
    %7 = vector.shape_cast %6 : vector<304xf32> to vector<304x1xf32>
    %8 = vector.broadcast %7 : vector<304x1xf32> to vector<304x128xf32>
    %9 = arith.subf %5, %8 : vector<304x128xf32>
    %10 = math.exp %9 : vector<304x128xf32>
    %cst_6 = arith.constant dense<0.000000e+00> : vector<304xf32>
    %11 = vector.multi_reduction <add>, %10, %cst_6 [1] : vector<304x128xf32> to vector<304xf32>
    %12 = vector.shape_cast %11 : vector<304xf32> to vector<304x1xf32>
    %13 = tpu.reciprocal %12 {approx = true} : vector<304x1xf32> -> vector<304x1xf32>
    %14 = vector.broadcast %13 : vector<304x1xf32> to vector<304x128xf32>
    %15 = arith.mulf %10, %14 : vector<304x128xf32>
    %c0_7 = arith.constant 0 : index
    %c0_8 = arith.constant 0 : index
    %16 = vector.load %arg4[%c0_7, %c0_8] : memref<304x128xf32, #tpu.memory_space<vmem>>, vector<304x128xf32>
    tpu.vector_store %arg4[%c0_7, %c0_8], %15 {strides = array<i32>} : memref<304x128xf32, #tpu.memory_space<vmem>>, vector<304x128xf32>,
    return
  }
  func.func @transform_0(%arg0: i32) -> (i32, i32) {
    %c0_i32 = arith.constant 0 : i32
    %c0_i32_0 = arith.constant 0 : i32
    return %arg0, %c0_i32 : i32, i32
  }
  func.func @transform_1(%arg0: i32) -> (i32, i32) {
    %c0_i32 = arith.constant 0 : i32
    %c0_i32_0 = arith.constant 0 : i32
    %c0_i32_1 = arith.constant 0 : i32
    return %c0_i32, %c0_i32_0 : i32, i32
  }
  func.func @transform_2(%arg0: i32) -> (i32, i32) {
    %c0_i32 = arith.constant 0 : i32
    %c0_i32_0 = arith.constant 0 : i32
    %c0_i32_1 = arith.constant 0 : i32
    return %c0_i32, %c0_i32_0 : i32, i32
  }
  func.func @transform_3(%arg0: i32) -> (i32, i32) {
    %c0_i32 = arith.constant 0 : i32
    %c0_i32_0 = arith.constant 0 : i32
    return %arg0, %c0_i32 : i32, i32
  }
}

</mosaic_0001>

<llo_original>
// kernel: tpu_custom_call.1
$region0: #{tpu_custom_call.1}
  #allocation0 [shape = 'u32[]', space=smem, size = 0x4, offset = 0x4, fixed_abs, tag = 'smem constant byte address 0x4 - core index']
  #allocation1 [shape = 'u32[144,128]{1,0:T(1,128)}', space=vmem, size = 0x12000, scoped, tag = 'internal scratch']
  %s0 = inlined_call_operand.hbm [shape: f32[304,256], index: 0, kind: input, shape index: {}]
  %s1 = inlined_call_operand.hbm [shape: f32[256,128], index: 1, kind: input, shape index: {}]
  %s2 = inlined_call_operand.vmem [shape: f32[1,128], index: 2, kind: input, shape index: {}]
  %s3 = inlined_call_operand.hbm [shape: f32[304,128], index: 3, kind: output, shape index: {}]
  %s4 = sld [smem:[#allocation0]]
  $region30: #{tpu_custom_call.1} parent=0
    _
  %s6 = ssub.s32 1, %s4
  %s7 = scalar_select 0, %s6, %s4
  $region1: #{tpu_custom_call.1} parent=0
    #allocation2 [shape = 'u8[311296]{0}', space=vmem, size = 0x4c000, scoped, tag = 'input window, operand 0, single buffered']
    #allocation3 [shape = 's32[1]{0}', space=sflag, size = 0x4, scoped, tag = 'scoped memory for tpu_custom_call.1']
    #allocation4 [shape = 's32[1]{0}', space=sflag, size = 0x4, scoped, tag = 'scoped memory for tpu_custom_call.1']
    #allocation5 [shape = 'u8[131072]{0}', space=vmem, size = 0x20000, scoped, tag = 'input window, operand 1, single buffered']
    #allocation6 [shape = 's32[1]{0}', space=sflag, size = 0x4, scoped, tag = 'scoped memory for tpu_custom_call.1']
    #allocation7 [shape = 'u8[155648]{0}', space=vmem, size = 0x26000, scoped, tag = 'output window, operand 0, single buffered']
    %8 = vsyncpa [#allocation3], 0
    %9 = vsyncpa [#allocation6], 0
    %10 = vsyncpa [#allocation4], 0
    // Predicated region
    $region2: #{tpu_custom_call.1} parent=1 // pred_check
      _
    $region3: #{tpu_custom_call.1} parent=1 // pred_check_branch
      %12 = sbr.rel (0) target = $region5
    $region4: #{tpu_custom_call.1} parent=1 // pred_region
      %s14 = ssub.s32 9728, 9728
      %15 = vsyncadd [#allocation3], %s14
      %s16 = sshll.u32 [#allocation2], 4
      %s17 = int_to_ptr.vmem [resolvable:$true] %s16
      %22 = dma.hbm_to_vmem [thread:$0]  %s0, 9728, %s17, [#allocation3], 256, 256, 16
    $region5: #{tpu_custom_call.1} parent=1 // pred_fallthru
      _
    // Predicated region
    $region6: #{tpu_custom_call.1} parent=1 // pred_check
      _
    $region7: #{tpu_custom_call.1} parent=1 // pred_check_branch
      %24 = sbr.rel (0) target = $region9
    $region8: #{tpu_custom_call.1} parent=1 // pred_region
      %s26 = ssub.s32 4096, 4096
      %27 = vsyncadd [#allocation6], %s26
      %s28 = sshll.u32 [#allocation5], 4
      %s29 = int_to_ptr.vmem [resolvable:$true] %s28
      %34 = dma.hbm_to_vmem [thread:$0]  %s1, 4096, %s29, [#allocation6], 128, 128, 8
    $region9: #{tpu_custom_call.1} parent=1 // pred_fallthru
      _
    // Predicated region
    $region10: #{tpu_custom_call.1} parent=1 // pred_check
      _
    $region11: #{tpu_custom_call.1} parent=1 // pred_check_branch
      %36 = sbr.rel (0) target = $region13
    $region12: #{tpu_custom_call.1} parent=1 // pred_region
      _
    $region13: #{tpu_custom_call.1} parent=1 // pred_fallthru
      _
    // Predicated region
    $region14: #{tpu_custom_call.1} parent=1 // pred_check
      _
    $region15: #{tpu_custom_call.1} parent=1 // pred_check_branch
      %38 = sbr.rel (0) target = $region17
    $region16: #{tpu_custom_call.1} parent=1 // pred_region
      %39 = dma.done [#allocation3], 9728
    $region17: #{tpu_custom_call.1} parent=1 // pred_fallthru
      _
    // Predicated region
    $region18: #{tpu_custom_call.1} parent=1 // pred_check
      _
    $region19: #{tpu_custom_call.1} parent=1 // pred_check_branch
      %41 = sbr.rel (0) target = $region21
    $region20: #{tpu_custom_call.1} parent=1 // pred_region
      %42 = dma.done [#allocation6], 4096
    $region21: #{tpu_custom_call.1} parent=1 // pred_fallthru
      _
    %v43 = vld [vmem:[#allocation2] sm:$0xff]
    %v44 = vld [vmem:[#allocation2 + $0x8] sm:$0xff]
    %v45 = vld [vmem:[#allocation2 + $0x10] sm:$0xff]
    %v46 = vld [vmem:[#allocation2 + $0x18] sm:$0xff]
    %v47 = vld [vmem:[#allocation2 + $0x20] sm:$0xff]
    %v48 = vld [vmem:[#allocation2 + $0x28] sm:$0xff]
    %v49 = vld [vmem:[#allocation2 + $0x30] sm:$0xff]
    %v50 = vld [vmem:[#allocation2 + $0x38] sm:$0xff]
    %v51 = vld [vmem:[#allocation2 + $0x40] sm:$0xff]
    %v52 = vld [vmem:[#allocation2 + $0x48] sm:$0xff]
    %v53 = vld [vmem:[#allocation2 + $0x50] sm:$0xff]
    %v54 = vld [vmem:[#allocation2 + $0x58] sm:$0xff]
    %v55 = vld [vmem:[#allocation2 + $0x60] sm:$0xff]
    %v56 = vld [vmem:[#allocation2 + $0x68] sm:$0xff]
    %v57 = vld [vmem:[#allocation2 + $0x70] sm:$0xff]
    %v58 = vld [vmem:[#allocation2 + $0x78] sm:$0xff]
    %v59 = vld [vmem:[#allocation2 + $0x80] sm:$0xff]
    %v60 = vld [vmem:[#allocation2 + $0x88] sm:$0xff]
    %v61 = vld [vmem:[#allocation2 + $0x90] sm:$0xff]
    %v62 = vld [vmem:[#allocation2 + $0x98] sm:$0xff]
    %v63 = vld [vmem:[#allocation2 + $0xa0] sm:$0xff]
    %v64 = vld [vmem:[#allocation2 + $0xa8] sm:$0xff]
    %v65 = vld [vmem:[#allocation2 + $0xb0] sm:$0xff]
    %v66 = vld [vmem:[#allocation2 + $0xb8] sm:$0xff]
    %v67 = vld [vmem:[#allocation2 + $0xc0] sm:$0xff]
    %v68 = vld [vmem:[#allocation2 + $0xc8] sm:$0xff]
    %v69 = vld [vmem:[#allocation2 + $0xd0] sm:$0xff]
    %v70 = vld [vmem:[#allocation2 + $0xd8] sm:$0xff]
    %v71 = vld [vmem:[#allocation2 + $0xe0] sm:$0xff]
    %v72 = vld [vmem:[#allocation2 + $0xe8] sm:$0xff]
    %v73 = vld [vmem:[#allocation2 + $0xf0] sm:$0xff]
    %v74 = vld [vmem:[#allocation2 + $0xf8] sm:$0xff]
    %v75 = vld [vmem:[#allocation2 + $0x100] sm:$0xff]
    %v76 = vld [vmem:[#allocation2 + $0x108] sm:$0xff]
    %v77 = vld [vmem:[#allocation2 + $0x110] sm:$0xff]
    %v78 = vld [vmem:[#allocation2 + $0x118] sm:$0xff]
    %v79 = vld [vmem:[#allocation2 + $0x120] sm:$0xff]
    %v80 = vld [vmem:[#allocation2 + $0x128] sm:$0xff]
    %v81 = vld [vmem:[#allocation2 + $0x130] sm:$0xff]
    %v82 = vld [vmem:[#allocation2 + $0x138] sm:$0xff]
    %v83 = vld [vmem:[#allocation2 + $0x140] sm:$0xff]
    %v84 = vld [vmem:[#allocation2 + $0x148] sm:$0xff]
    %v85 = vld [vmem:[#allocation2 + $0x150] sm:$0xff]
    %v86 = vld [vmem:[#allocation2 + $0x158] sm:$0xff]
    %v87 = vld [vmem:[#allocation2 + $0x160] sm:$0xff]
    %v88 = vld [vmem:[#allocation2 + $0x168] sm:$0xff]
    %v89 = vld [vmem:[#allocation2 + $0x170] sm:$0xff]
    %v90 = vld [vmem:[#allocation2 + $0x178] sm:$0xff]
    %v91 = vld [vmem:[#allocation2 + $0x180] sm:$0xff]
    %v92 = vld [vmem:[#allocation2 + $0x188] sm:$0xff]
    %v93 = vld [vmem:[#allocation2 + $0x190] sm:$0xff]
    %v94 = vld [vmem:[#allocation2 + $0x198] sm:$0xff]
    %v95 = vld [vmem:[#allocation2 + $0x1a0] sm:$0xff]
    %v96 = vld [vmem:[#allocation2 + $0x1a8] sm:$0xff]
    %v97 = vld [vmem:[#allocation2 + $0x1b0] sm:$0xff]
    %v98 = vld [vmem:[#allocation2 + $0x1b8] sm:$0xff]
    %v99 = vld [vmem:[#allocation2 + $0x1c0] sm:$0xff]
    %v100 = vld [vmem:[#allocation2 + $0x1c8] sm:$0xff]
    %v101 = vld [vmem:[#allocation2 + $0x1d0] sm:$0xff]
    %v102 = vld [vmem:[#allocation2 + $0x1d8] sm:$0xff]
    %v103 = vld [vmem:[#allocation2 + $0x1e0] sm:$0xff]
    %v104 = vld [vmem:[#allocation2 + $0x1e8] sm:$0xff]
    %v105 = vld [vmem:[#allocation2 + $0x1f0] sm:$0xff]
    %v106 = vld [vmem:[#allocation2 + $0x1f8] sm:$0xff]
    %v107 = vld [vmem:[#allocation2 + $0x200] sm:$0xff]
    %v108 = vld [vmem:[#allocation2 + $0x208] sm:$0xff]
    %v109 = vld [vmem:[#allocation2 + $0x210] sm:$0xff]
    %v110 = vld [vmem:[#allocation2 + $0x218] sm:$0xff]
    %v111 = vld [vmem:[#allocation2 + $0x220] sm:$0xff]
    %v112 = vld [vmem:[#allocation2 + $0x228] sm:$0xff]
    %v113 = vld [vmem:[#allocation2 + $0x230] sm:$0xff]
    %v114 = vld [vmem:[#allocation2 + $0x238] sm:$0xff]
    %v115 = vld [vmem:[#allocation2 + $0x240] sm:$0xff]
    %v116 = vld [vmem:[#allocation2 + $0x248] sm:$0xff]
    %v117 = vld [vmem:[#allocation2 + $0x250] sm:$0xff]
    %v118 = vld [vmem:[#allocation2 + $0x258] sm:$0xff]
    %v119 = vld [vmem:[#allocation5] sm:$0xff]
    %v120 = vld [vmem:[#allocation5 + $0x8] sm:$0xff]
    %v121 = vld [vmem:[#allocation5 + $0x10] sm:$0xff]
    %v122 = vld [vmem:[#allocation5 + $0x18] sm:$0xff]
    %v123 = vld [vmem:[#allocation5 + $0x20] sm:$0xff]
    %v124 = vld [vmem:[#allocation5 + $0x28] sm:$0xff]
    %v125 = vld [vmem:[#allocation5 + $0x30] sm:$0xff]
    %v126 = vld [vmem:[#allocation5 + $0x38] sm:$0xff]
    %v127 = vld [vmem:[#allocation5 + $0x40] sm:$0xff]
    %v128 = vld [vmem:[#allocation5 + $0x48] sm:$0xff]
    %v129 = vld [vmem:[#allocation5 + $0x50] sm:$0xff]
    %v130 = vld [vmem:[#allocation5 + $0x58] sm:$0xff]
    %v131 = vld [vmem:[#allocation5 + $0x60] sm:$0xff]
    %v132 = vld [vmem:[#allocation5 + $0x68] sm:$0xff]
    %v133 = vld [vmem:[#allocation5 + $0x70] sm:$0xff]
    %v134 = vld [vmem:[#allocation5 + $0x78] sm:$0xff]
    %v135 = vld [vmem:[#allocation5 + $0x80] sm:$0xff]
    %v136 = vld [vmem:[#allocation5 + $0x88] sm:$0xff]
    %v137 = vld [vmem:[#allocation5 + $0x90] sm:$0xff]
    %v138 = vld [vmem:[#allocation5 + $0x98] sm:$0xff]
    %v139 = vld [vmem:[#allocation5 + $0xa0] sm:$0xff]
    %v140 = vld [vmem:[#allocation5 + $0xa8] sm:$0xff]
    %v141 = vld [vmem:[#allocation5 + $0xb0] sm:$0xff]
    %v142 = vld [vmem:[#allocation5 + $0xb8] sm:$0xff]
    %v143 = vld [vmem:[#allocation5 + $0xc0] sm:$0xff]
    %v144 = vld [vmem:[#allocation5 + $0xc8] sm:$0xff]
    %v145 = vld [vmem:[#allocation5 + $0xd0] sm:$0xff]
    %v146 = vld [vmem:[#allocation5 + $0xd8] sm:$0xff]
    %v147 = vld [vmem:[#allocation5 + $0xe0] sm:$0xff]
    %v148 = vld [vmem:[#allocation5 + $0xe8] sm:$0xff]
    %v149 = vld [vmem:[#allocation5 + $0xf0] sm:$0xff]
    %v150 = vld [vmem:[#allocation5 + $0xf8] sm:$0xff]
    %v151 = vld [vmem:[%s2] sm:$0x1]
    %v153 = vlaneseq
    %v154 = vshrl.u32 %v153, 7
    %v155 = vsub.s32 0, %v154
    %v156 = vrot.slane %v151, %v155
    %158 = vmatprep.subr.mxu0 0.0
    %159 = vmatpush1.msra.mxu0 %v134
    %160 = vmatprep.subr.mxu0 0.0
    %161 = vmatpush1.msra.mxu0 %v133
    %162 = vmatprep.subr.mxu0 0.0
    %163 = vmatpush1.msra.mxu0 %v132
    %164 = vmatprep.subr.mxu0 0.0
    %165 = vmatpush1.msra.mxu0 %v131
    %166 = vmatprep.subr.mxu0 0.0
    %167 = vmatpush1.msra.mxu0 %v130
    %168 = vmatprep.subr.mxu0 0.0
    %169 = vmatpush1.msra.mxu0 %v129
    %170 = vmatprep.subr.mxu0 0.0
    %171 = vmatpush1.msra.mxu0 %v128
    %172 = vmatprep.subr.mxu0 0.0
    %173 = vmatpush1.msra.mxu0 %v127
    %174 = vmatprep.subr.mxu0 0.0
    %175 = vmatpush1.msra.mxu0 %v126
    %176 = vmatprep.subr.mxu0 0.0
    %177 = vmatpush1.msra.mxu0 %v125
    %178 = vmatprep.subr.mxu0 0.0
    %179 = vmatpush1.msra.mxu0 %v124
    %180 = vmatprep.subr.mxu0 0.0
    %181 = vmatpush1.msra.mxu0 %v123
    %182 = vmatprep.subr.mxu0 0.0
    %183 = vmatpush1.msra.mxu0 %v122
    %184 = vmatprep.subr.mxu0 0.0
    %185 = vmatpush1.msra.mxu0 %v121
    %186 = vmatprep.subr.mxu0 0.0
    %187 = vmatpush1.msra.mxu0 %v120
    %188 = vmatprep.subr.mxu0 0.0
    %189 = vmatpush1.msra.mxu0 %v119
    %190 = vmatprep.subr.mxu0 0.0
    %191 = vmatpush2.msra.mxu0 %v150
    %192 = vmatprep.subr.mxu0 0.0
    %193 = vmatpush2.msra.mxu0 %v149
    %194 = vmatprep.subr.mxu0 0.0
    %195 = vmatpush2.msra.mxu0 %v148
    %196 = vmatprep.subr.mxu0 0.0
    %197 = vmatpush2.msra.mxu0 %v147
    %198 = vmatprep.subr.mxu0 0.0
    %199 = vmatpush2.msra.mxu0 %v146
    %200 = vmatprep.subr.mxu0 0.0
    %201 = vmatpush2.msra.mxu0 %v145
    %202 = vmatprep.subr.mxu0 0.0
    %203 = vmatpush2.msra.mxu0 %v144
    %204 = vmatprep.subr.mxu0 0.0
    %205 = vmatpush2.msra.mxu0 %v143
    %206 = vmatprep.subr.mxu0 0.0
    %207 = vmatpush2.msra.mxu0 %v142
    %208 = vmatprep.subr.mxu0 0.0
    %209 = vmatpush2.msra.mxu0 %v141
    %210 = vmatprep.subr.mxu0 0.0
    %211 = vmatpush2.msra.mxu0 %v140
    %212 = vmatprep.subr.mxu0 0.0
    %213 = vmatpush2.msra.mxu0 %v139
    %214 = vmatprep.subr.mxu0 0.0
    %215 = vmatpush2.msra.mxu0 %v138
    %216 = vmatprep.subr.mxu0 0.0
    %217 = vmatpush2.msra.mxu0 %v137
    %218 = vmatprep.subr.mxu0 0.0
    %219 = vmatpush2.msra.mxu0 %v136
    %220 = vmatprep.subr.mxu0 0.0
    %221 = vmatpush2.msra.mxu0 %v135
    %222 = vmatprep.mubr.f32.mxu0 %v44
    %223 = vmatmul.mubr.f32.gmra.mxu0 %v43
    %v224 = vpop.f32.mrf.mxu0
    %v225 = vadd.f32 %v156, %v224
    %v226 = vpop.f32.mrf.mxu0
    %227 = vmatprep.mubr.f32.mxu0 %v46
    %228 = vmatmul.mubr.f32.gmra.mxu0 %v45
    %v229 = vpop.f32.mrf.mxu0
    %v230 = vadd.f32 %v156, %v229
    %v231 = vpop.f32.mrf.mxu0
    %232 = vmatprep.mubr.f32.mxu0 %v48
    %233 = vmatmul.mubr.f32.gmra.mxu0 %v47
    %v234 = vpop.f32.mrf.mxu0
    %v235 = vadd.f32 %v156, %v234
    %v236 = vpop.f32.mrf.mxu0
    %237 = vmatprep.mubr.f32.mxu0 %v50
    %238 = vmatmul.mubr.f32.gmra.mxu0 %v49
    %v239 = vpop.f32.mrf.mxu0
    %v240 = vadd.f32 %v156, %v239
    %v241 = vpop.f32.mrf.mxu0
    %242 = vmatprep.mubr.f32.mxu0 %v52
    %243 = vmatmul.mubr.f32.gmra.mxu0 %v51
    %v244 = vpop.f32.mrf.mxu0
    %v245 = vadd.f32 %v156, %v244
    %v246 = vpop.f32.mrf.mxu0
    %247 = vmatprep.mubr.f32.mxu0 %v54
    %248 = vmatmul.mubr.f32.gmra.mxu0 %v53
    %v249 = vpop.f32.mrf.mxu0
    %v250 = vadd.f32 %v156, %v249
    %v251 = vpop.f32.mrf.mxu0
    %252 = vmatprep.mubr.f32.mxu0 %v56
    %253 = vmatmul.mubr.f32.gmra.mxu0 %v55
    %v254 = vpop.f32.mrf.mxu0
    %v255 = vadd.f32 %v156, %v254
    %v256 = vpop.f32.mrf.mxu0
    %257 = vmatprep.mubr.f32.mxu0 %v58
    %258 = vmatmul.mubr.f32.gmra.mxu0 %v57
    %v259 = vpop.f32.mrf.mxu0
    %v260 = vadd.f32 %v156, %v259
    %v261 = vpop.f32.mrf.mxu0
    %262 = vmatprep.mubr.f32.mxu0 %v60
    %263 = vmatmul.mubr.f32.gmra.mxu0 %v59
    %v264 = vpop.f32.mrf.mxu0
    %v265 = vadd.f32 %v156, %v264
    %v266 = vpop.f32.mrf.mxu0
    %267 = vmatprep.mubr.f32.mxu0 %v62
    %268 = vmatmul.mubr.f32.gmra.mxu0 %v61
    %v269 = vpop.f32.mrf.mxu0
    %v270 = vadd.f32 %v156, %v269
    %v271 = vpop.f32.mrf.mxu0
    %272 = vmatprep.mubr.f32.mxu0 %v64
    %273 = vmatmul.mubr.f32.gmra.mxu0 %v63
    %v274 = vpop.f32.mrf.mxu0
    %v275 = vadd.f32 %v156, %v274
    %v276 = vpop.f32.mrf.mxu0
    %277 = vmatprep.mubr.f32.mxu0 %v66
    %278 = vmatmul.mubr.f32.gmra.mxu0 %v65
    %v279 = vpop.f32.mrf.mxu0
    %v280 = vadd.f32 %v156, %v279
    %v281 = vpop.f32.mrf.mxu0
    %282 = vmatprep.mubr.f32.mxu0 %v68
    %283 = vmatmul.mubr.f32.gmra.mxu0 %v67
    %v284 = vpop.f32.mrf.mxu0
    %v285 = vadd.f32 %v156, %v284
    %v286 = vpop.f32.mrf.mxu0
    %287 = vmatprep.mubr.f32.mxu0 %v70
    %288 = vmatmul.mubr.f32.gmra.mxu0 %v69
    %v289 = vpop.f32.mrf.mxu0
    %v290 = vadd.f32 %v156, %v289
    %v291 = vpop.f32.mrf.mxu0
    %292 = vmatprep.mubr.f32.mxu0 %v72
    %293 = vmatmul.mubr.f32.gmra.mxu0 %v71
    %v294 = vpop.f32.mrf.mxu0
    %v295 = vadd.f32 %v156, %v294
    %v296 = vpop.f32.mrf.mxu0
    %297 = vmatprep.mubr.f32.mxu0 %v74
    %298 = vmatmul.mubr.f32.gmra.mxu0 %v73
    %v299 = vpop.f32.mrf.mxu0
    %v300 = vadd.f32 %v156, %v299
    %v301 = vpop.f32.mrf.mxu0
    %302 = vmatprep.mubr.f32.mxu0 %v76
    %303 = vmatmul.mubr.f32.gmra.mxu0 %v75
    %v304 = vpop.f32.mrf.mxu0
    %v305 = vadd.f32 %v156, %v304
    %v306 = vpop.f32.mrf.mxu0
    %307 = vmatprep.mubr.f32.mxu0 %v78
    %308 = vmatmul.mubr.f32.gmra.mxu0 %v77
    %v309 = vpop.f32.mrf.mxu0
    %v310 = vadd.f32 %v156, %v309
    %v311 = vpop.f32.mrf.mxu0
    %312 = vmatprep.mubr.f32.mxu0 %v80
    %313 = vmatmul.mubr.f32.gmra.mxu0 %v79
    %v314 = vpop.f32.mrf.mxu0
    %v315 = vadd.f32 %v156, %v314
    %v316 = vpop.f32.mrf.mxu0
    %317 = vmatprep.mubr.f32.mxu0 %v82
    %318 = vmatmul.mubr.f32.gmra.mxu0 %v81
    %v319 = vpop.f32.mrf.mxu0
    %v320 = vadd.f32 %v156, %v319
    %v321 = vpop.f32.mrf.mxu0
    %322 = vmatprep.mubr.f32.mxu0 %v84
    %323 = vmatmul.mubr.f32.gmra.mxu0 %v83
    %v324 = vpop.f32.mrf.mxu0
    %v325 = vadd.f32 %v156, %v324
    %v326 = vpop.f32.mrf.mxu0
    %327 = vmatprep.mubr.f32.mxu0 %v86
    %328 = vmatmul.mubr.f32.gmra.mxu0 %v85
    %v329 = vpop.f32.mrf.mxu0
    %v330 = vadd.f32 %v156, %v329
    %v331 = vpop.f32.mrf.mxu0
    %332 = vmatprep.mubr.f32.mxu0 %v88
    %333 = vmatmul.mubr.f32.gmra.mxu0 %v87
    %v334 = vpop.f32.mrf.mxu0
    %v335 = vadd.f32 %v156, %v334
    %v336 = vpop.f32.mrf.mxu0
    %337 = vmatprep.mubr.f32.mxu0 %v90
    %338 = vmatmul.mubr.f32.gmra.mxu0 %v89
    %v339 = vpop.f32.mrf.mxu0
    %v340 = vadd.f32 %v156, %v339
    %v341 = vpop.f32.mrf.mxu0
    %342 = vmatprep.mubr.f32.mxu0 %v92
    %343 = vmatmul.mubr.f32.gmra.mxu0 %v91
    %v344 = vpop.f32.mrf.mxu0
    %v345 = vadd.f32 %v156, %v344
    %v346 = vpop.f32.mrf.mxu0
    %347 = vmatprep.mubr.f32.mxu0 %v94
    %348 = vmatmul.mubr.f32.gmra.mxu0 %v93
    %v349 = vpop.f32.mrf.mxu0
    %v350 = vadd.f32 %v156, %v349
    %v351 = vpop.f32.mrf.mxu0
    %352 = vmatprep.mubr.f32.mxu0 %v96
    %353 = vmatmul.mubr.f32.gmra.mxu0 %v95
    %v354 = vpop.f32.mrf.mxu0
    %v355 = vadd.f32 %v156, %v354
    %v356 = vpop.f32.mrf.mxu0
    %357 = vmatprep.mubr.f32.mxu0 %v98
    %358 = vmatmul.mubr.f32.gmra.mxu0 %v97
    %v359 = vpop.f32.mrf.mxu0
    %v360 = vadd.f32 %v156, %v359
    %v361 = vpop.f32.mrf.mxu0
    %362 = vmatprep.mubr.f32.mxu0 %v100
    %363 = vmatmul.mubr.f32.gmra.mxu0 %v99
    %v364 = vpop.f32.mrf.mxu0
    %v365 = vadd.f32 %v156, %v364
    %v366 = vpop.f32.mrf.mxu0
    %367 = vmatprep.mubr.f32.mxu0 %v102
    %368 = vmatmul.mubr.f32.gmra.mxu0 %v101
    %v369 = vpop.f32.mrf.mxu0
    %v370 = vadd.f32 %v156, %v369
    %v371 = vpop.f32.mrf.mxu0
    %372 = vmatprep.mubr.f32.mxu0 %v104
    %373 = vmatmul.mubr.f32.gmra.mxu0 %v103
    %v374 = vpop.f32.mrf.mxu0
    %v375 = vadd.f32 %v156, %v374
    %v376 = vpop.f32.mrf.mxu0
    %377 = vmatprep.mubr.f32.mxu0 %v106
    %378 = vmatmul.mubr.f32.gmra.mxu0 %v105
    %v379 = vpop.f32.mrf.mxu0
    %v380 = vadd.f32 %v156, %v379
    %v381 = vpop.f32.mrf.mxu0
    %382 = vmatprep.mubr.f32.mxu0 %v108
    %383 = vmatmul.mubr.f32.gmra.mxu0 %v107
    %v384 = vpop.f32.mrf.mxu0
    %v385 = vadd.f32 %v156, %v384
    %v386 = vpop.f32.mrf.mxu0
    %387 = vmatprep.mubr.f32.mxu0 %v110
    %388 = vmatmul.mubr.f32.gmra.mxu0 %v109
    %v389 = vpop.f32.mrf.mxu0
    %v390 = vadd.f32 %v156, %v389
    %v391 = vpop.f32.mrf.mxu0
    %392 = vmatprep.mubr.f32.mxu0 %v112
    %393 = vmatmul.mubr.f32.gmra.mxu0 %v111
    %v394 = vpop.f32.mrf.mxu0
    %v395 = vadd.f32 %v156, %v394
    %v396 = vpop.f32.mrf.mxu0
    %397 = vmatprep.mubr.f32.mxu0 %v114
    %398 = vmatmul.mubr.f32.gmra.mxu0 %v113
    %v399 = vpop.f32.mrf.mxu0
    %v400 = vadd.f32 %v156, %v399
    %v401 = vpop.f32.mrf.mxu0
    %402 = vmatprep.mubr.f32.mxu0 %v116
    %403 = vmatmul.mubr.f32.gmra.mxu0 %v115
    %v404 = vpop.f32.mrf.mxu0
    %v405 = vadd.f32 %v156, %v404
    %v406 = vpop.f32.mrf.mxu0
    %407 = vmatprep.mubr.f32.mxu0 %v118
    %408 = vmatmul.mubr.f32.gmra.mxu0 %v117
    %v409 = vpop.f32.mrf.mxu0
    %v410 = vadd.f32 %v156, %v409
    %v411 = vpop.f32.mrf.mxu0
    %412 = vdwg.mxu0
    %413 = vmax.xlane.f32.xlu0 %v225
    %v414 = vpop.xlane.xlu0 %413
    %415 = vmax.xlane.f32.xlu0 %v230
    %v416 = vpop.xlane.xlu0 %415
    %417 = vmax.xlane.f32.xlu0 %v235
    %v418 = vpop.xlane.xlu0 %417
    %419 = vmax.xlane.f32.xlu0 %v240
    %v420 = vpop.xlane.xlu0 %419
    %421 = vmax.xlane.f32.xlu0 %v245
    %v422 = vpop.xlane.xlu0 %421
    %423 = vmax.xlane.f32.xlu0 %v250
    %v424 = vpop.xlane.xlu0 %423
    %425 = vmax.xlane.f32.xlu0 %v255
    %v426 = vpop.xlane.xlu0 %425
    %427 = vmax.xlane.f32.xlu0 %v260
    %v428 = vpop.xlane.xlu0 %427
    %429 = vmax.xlane.f32.xlu0 %v265
    %v430 = vpop.xlane.xlu0 %429
    %431 = vmax.xlane.f32.xlu0 %v270
    %v432 = vpop.xlane.xlu0 %431
    %433 = vmax.xlane.f32.xlu0 %v275
    %v434 = vpop.xlane.xlu0 %433
    %435 = vmax.xlane.f32.xlu0 %v280
    %v436 = vpop.xlane.xlu0 %435
    %437 = vmax.xlane.f32.xlu0 %v285
    %v438 = vpop.xlane.xlu0 %437
    %439 = vmax.xlane.f32.xlu0 %v290
    %v440 = vpop.xlane.xlu0 %439
    %441 = vmax.xlane.f32.xlu0 %v295
    %v442 = vpop.xlane.xlu0 %441
    %443 = vmax.xlane.f32.xlu0 %v300
    %v444 = vpop.xlane.xlu0 %443
    %445 = vmax.xlane.f32.xlu0 %v305
    %v446 = vpop.xlane.xlu0 %445
    %447 = vmax.xlane.f32.xlu0 %v310
    %v448 = vpop.xlane.xlu0 %447
    %449 = vmax.xlane.f32.xlu0 %v315
    %v450 = vpop.xlane.xlu0 %449
    %451 = vmax.xlane.f32.xlu0 %v320
    %v452 = vpop.xlane.xlu0 %451
    %453 = vmax.xlane.f32.xlu0 %v325
    %v454 = vpop.xlane.xlu0 %453
    %455 = vmax.xlane.f32.xlu0 %v330
    %v456 = vpop.xlane.xlu0 %455
    %457 = vmax.xlane.f32.xlu0 %v335
    %v458 = vpop.xlane.xlu0 %457
    %459 = vmax.xlane.f32.xlu0 %v340
    %v460 = vpop.xlane.xlu0 %459
    %461 = vmax.xlane.f32.xlu0 %v345
    %v462 = vpop.xlane.xlu0 %461
    %463 = vmax.xlane.f32.xlu0 %v350
    %v464 = vpop.xlane.xlu0 %463
    %465 = vmax.xlane.f32.xlu0 %v355
    %v466 = vpop.xlane.xlu0 %465
    %467 = vmax.xlane.f32.xlu0 %v360
    %v468 = vpop.xlane.xlu0 %467
    %469 = vmax.xlane.f32.xlu0 %v365
    %v470 = vpop.xlane.xlu0 %469
    %471 = vmax.xlane.f32.xlu0 %v370
    %v472 = vpop.xlane.xlu0 %471
    %473 = vmax.xlane.f32.xlu0 %v375
    %v474 = vpop.xlane.xlu0 %473
    %475 = vmax.xlane.f32.xlu0 %v380
    %v476 = vpop.xlane.xlu0 %475
    %477 = vmax.xlane.f32.xlu0 %v385
    %v478 = vpop.xlane.xlu0 %477
    %479 = vmax.xlane.f32.xlu0 %v390
    %v480 = vpop.xlane.xlu0 %479
    %481 = vmax.xlane.f32.xlu0 %v395
    %v482 = vpop.xlane.xlu0 %481
    %483 = vmax.xlane.f32.xlu0 %v400
    %v484 = vpop.xlane.xlu0 %483
    %485 = vmax.xlane.f32.xlu0 %v405
    %v486 = vpop.xlane.xlu0 %485
    %487 = vmax.xlane.f32.xlu0 %v410
    %v488 = vpop.xlane.xlu0 %487
    %v489 = vsub.f32 %v225, %v414
    %v490 = vsub.f32 %v230, %v416
    %v491 = vsub.f32 %v235, %v418
    %v492 = vsub.f32 %v240, %v420
    %v493 = vsub.f32 %v245, %v422
    %v494 = vsub.f32 %v250, %v424
    %v495 = vsub.f32 %v255, %v426
    %v496 = vsub.f32 %v260, %v428
    %v497 = vsub.f32 %v265, %v430
    %v498 = vsub.f32 %v270, %v432
    %v499 = vsub.f32 %v275, %v434
    %v500 = vsub.f32 %v280, %v436
    %v501 = vsub.f32 %v285, %v438
    %v502 = vsub.f32 %v290, %v440
    %v503 = vsub.f32 %v295, %v442
    %v504 = vsub.f32 %v300, %v444
    %v505 = vsub.f32 %v305, %v446
    %v506 = vsub.f32 %v310, %v448
    %v507 = vsub.f32 %v315, %v450
    %v508 = vsub.f32 %v320, %v452
    %v509 = vsub.f32 %v325, %v454
    %v510 = vsub.f32 %v330, %v456
    %v511 = vsub.f32 %v335, %v458
    %v512 = vsub.f32 %v340, %v460
    %v513 = vsub.f32 %v345, %v462
    %v514 = vsub.f32 %v350, %v464
    %v515 = vsub.f32 %v355, %v466
    %v516 = vsub.f32 %v360, %v468
    %v517 = vsub.f32 %v365, %v470
    %v518 = vsub.f32 %v370, %v472
    %v519 = vsub.f32 %v375, %v474
    %v520 = vsub.f32 %v380, %v476
    %v521 = vsub.f32 %v385, %v478
    %v522 = vsub.f32 %v390, %v480
    %v523 = vsub.f32 %v395, %v482
    %v524 = vsub.f32 %v400, %v484
    %v525 = vsub.f32 %v405, %v486
    %v526 = vsub.f32 %v410, %v488
    %v527 = vmul.f32 %v489, 1.442695
    %v528 = vpow.pop %v527
    %v529 = vmul.f32 %v490, 1.442695
    %v530 = vpow.pop %v529
    %v531 = vmul.f32 %v491, 1.442695
    %v532 = vpow.pop %v531
    %v533 = vmul.f32 %v492, 1.442695
    %v534 = vpow.pop %v533
    %v535 = vmul.f32 %v493, 1.442695
    %v536 = vpow.pop %v535
    %v537 = vmul.f32 %v494, 1.442695
    %v538 = vpow.pop %v537
    %v539 = vmul.f32 %v495, 1.442695
    %v540 = vpow.pop %v539
    %v541 = vmul.f32 %v496, 1.442695
    %v542 = vpow.pop %v541
    %v543 = vmul.f32 %v497, 1.442695
    %v544 = vpow.pop %v543
    %v545 = vmul.f32 %v498, 1.442695
    %v546 = vpow.pop %v545
    %v547 = vmul.f32 %v499, 1.442695
    %v548 = vpow.pop %v547
    %v549 = vmul.f32 %v500, 1.442695
    %v550 = vpow.pop %v549
    %v551 = vmul.f32 %v501, 1.442695
    %v552 = vpow.pop %v551
    %v553 = vmul.f32 %v502, 1.442695
    %v554 = vpow.pop %v553
    %v555 = vmul.f32 %v503, 1.442695
    %v556 = vpow.pop %v555
    %v557 = vmul.f32 %v504, 1.442695
    %v558 = vpow.pop %v557
    %v559 = vmul.f32 %v505, 1.442695
    %v560 = vpow.pop %v559
    %v561 = vmul.f32 %v506, 1.442695
    %v562 = vpow.pop %v561
    %v563 = vmul.f32 %v507, 1.442695
    %v564 = vpow.pop %v563
    %v565 = vmul.f32 %v508, 1.442695
    %v566 = vpow.pop %v565
    %v567 = vmul.f32 %v509, 1.442695
    %v568 = vpow.pop %v567
    %v569 = vmul.f32 %v510, 1.442695
    %v570 = vpow.pop %v569
    %v571 = vmul.f32 %v511, 1.442695
    %v572 = vpow.pop %v571
    %v573 = vmul.f32 %v512, 1.442695
    %v574 = vpow.pop %v573
    %v575 = vmul.f32 %v513, 1.442695
    %v576 = vpow.pop %v575
    %v577 = vmul.f32 %v514, 1.442695
    %v578 = vpow.pop %v577
    %v579 = vmul.f32 %v515, 1.442695
    %v580 = vpow.pop %v579
    %v581 = vmul.f32 %v516, 1.442695
    %v582 = vpow.pop %v581
    %v583 = vmul.f32 %v517, 1.442695
    %v584 = vpow.pop %v583
    %v585 = vmul.f32 %v518, 1.442695
    %v586 = vpow.pop %v585
    %v587 = vmul.f32 %v519, 1.442695
    %v588 = vpow.pop %v587
    %v589 = vmul.f32 %v520, 1.442695
    %v590 = vpow.pop %v589
    %v591 = vmul.f32 %v521, 1.442695
    %v592 = vpow.pop %v591
    %v593 = vmul.f32 %v522, 1.442695
    %v594 = vpow.pop %v593
    %v595 = vmul.f32 %v523, 1.442695
    %v596 = vpow.pop %v595
    %v597 = vmul.f32 %v524, 1.442695
    %v598 = vpow.pop %v597
    %v599 = vmul.f32 %v525, 1.442695
    %v600 = vpow.pop %v599
    %v601 = vmul.f32 %v526, 1.442695
    %v602 = vpow.pop %v601
    %603 = vadd.xlane.f32.xlu0 %v528
    %v604 = vpop.xlane.xlu0 %603
    %605 = vadd.xlane.f32.xlu0 %v530
    %v606 = vpop.xlane.xlu0 %605
    %607 = vadd.xlane.f32.xlu0 %v532
    %v608 = vpop.xlane.xlu0 %607
    %609 = vadd.xlane.f32.xlu0 %v534
    %v610 = vpop.xlane.xlu0 %609
    %611 = vadd.xlane.f32.xlu0 %v536
    %v612 = vpop.xlane.xlu0 %611
    %613 = vadd.xlane.f32.xlu0 %v538
    %v614 = vpop.xlane.xlu0 %613
    %615 = vadd.xlane.f32.xlu0 %v540
    %v616 = vpop.xlane.xlu0 %615
    %617 = vadd.xlane.f32.xlu0 %v542
    %v618 = vpop.xlane.xlu0 %617
    %619 = vadd.xlane.f32.xlu0 %v544
    %v620 = vpop.xlane.xlu0 %619
    %621 = vadd.xlane.f32.xlu0 %v546
    %v622 = vpop.xlane.xlu0 %621
    %623 = vadd.xlane.f32.xlu0 %v548
    %v624 = vpop.xlane.xlu0 %623
    %625 = vadd.xlane.f32.xlu0 %v550
    %v626 = vpop.xlane.xlu0 %625
    %627 = vadd.xlane.f32.xlu0 %v552
    %v628 = vpop.xlane.xlu0 %627
    %629 = vadd.xlane.f32.xlu0 %v554
    %v630 = vpop.xlane.xlu0 %629
    %631 = vadd.xlane.f32.xlu0 %v556
    %v632 = vpop.xlane.xlu0 %631
    %633 = vadd.xlane.f32.xlu0 %v558
    %v634 = vpop.xlane.xlu0 %633
    %635 = vadd.xlane.f32.xlu0 %v560
    %v636 = vpop.xlane.xlu0 %635
    %637 = vadd.xlane.f32.xlu0 %v562
    %v638 = vpop.xlane.xlu0 %637
    %639 = vadd.xlane.f32.xlu0 %v564
    %v640 = vpop.xlane.xlu0 %639
    %641 = vadd.xlane.f32.xlu0 %v566
    %v642 = vpop.xlane.xlu0 %641
    %643 = vadd.xlane.f32.xlu0 %v568
    %v644 = vpop.xlane.xlu0 %643
    %645 = vadd.xlane.f32.xlu0 %v570
    %v646 = vpop.xlane.xlu0 %645
    %647 = vadd.xlane.f32.xlu0 %v572
    %v648 = vpop.xlane.xlu0 %647
    %649 = vadd.xlane.f32.xlu0 %v574
    %v650 = vpop.xlane.xlu0 %649
    %651 = vadd.xlane.f32.xlu0 %v576
    %v652 = vpop.xlane.xlu0 %651
    %653 = vadd.xlane.f32.xlu0 %v578
    %v654 = vpop.xlane.xlu0 %653
    %655 = vadd.xlane.f32.xlu0 %v580
    %v656 = vpop.xlane.xlu0 %655
    %657 = vadd.xlane.f32.xlu0 %v582
    %v658 = vpop.xlane.xlu0 %657
    %659 = vadd.xlane.f32.xlu0 %v584
    %v660 = vpop.xlane.xlu0 %659
    %661 = vadd.xlane.f32.xlu0 %v586
    %v662 = vpop.xlane.xlu0 %661
    %663 = vadd.xlane.f32.xlu0 %v588
    %v664 = vpop.xlane.xlu0 %663
    %665 = vadd.xlane.f32.xlu0 %v590
    %v666 = vpop.xlane.xlu0 %665
    %667 = vadd.xlane.f32.xlu0 %v592
    %v668 = vpop.xlane.xlu0 %667
    %669 = vadd.xlane.f32.xlu0 %v594
    %v670 = vpop.xlane.xlu0 %669
    %671 = vadd.xlane.f32.xlu0 %v596
    %v672 = vpop.xlane.xlu0 %671
    %673 = vadd.xlane.f32.xlu0 %v598
    %v674 = vpop.xlane.xlu0 %673
    %675 = vadd.xlane.f32.xlu0 %v600
    %v676 = vpop.xlane.xlu0 %675
    %677 = vadd.xlane.f32.xlu0 %v602
    %v678 = vpop.xlane.xlu0 %677
    %v679 = vrcp.pop %v604
    %v680 = vrcp.pop %v606
    %v681 = vrcp.pop %v608
    %v682 = vrcp.pop %v610
    %v683 = vrcp.pop %v612
    %v684 = vrcp.pop %v614
    %v685 = vrcp.pop %v616
    %v686 = vrcp.pop %v618
    %v687 = vrcp.pop %v620
    %v688 = vrcp.pop %v622
    %v689 = vrcp.pop %v624
    %v690 = vrcp.pop %v626
    %v691 = vrcp.pop %v628
    %v692 = vrcp.pop %v630
    %v693 = vrcp.pop %v632
    %v694 = vrcp.pop %v634
    %v695 = vrcp.pop %v636
    %v696 = vrcp.pop %v638
    %v697 = vrcp.pop %v640
    %v698 = vrcp.pop %v642
    %v699 = vrcp.pop %v644
    %v700 = vrcp.pop %v646
    %v701 = vrcp.pop %v648
    %v702 = vrcp.pop %v650
    %v703 = vrcp.pop %v652
    %v704 = vrcp.pop %v654
    %v705 = vrcp.pop %v656
    %v706 = vrcp.pop %v658
    %v707 = vrcp.pop %v660
    %v708 = vrcp.pop %v662
    %v709 = vrcp.pop %v664
    %v710 = vrcp.pop %v666
    %v711 = vrcp.pop %v668
    %v712 = vrcp.pop %v670
    %v713 = vrcp.pop %v672
    %v714 = vrcp.pop %v674
    %v715 = vrcp.pop %v676
    %v716 = vrcp.pop %v678
    %v717 = vmul.f32 %v528, %v679
    %v718 = vmul.f32 %v530, %v680
    %v719 = vmul.f32 %v532, %v681
    %v720 = vmul.f32 %v534, %v682
    %v721 = vmul.f32 %v536, %v683
    %v722 = vmul.f32 %v538, %v684
    %v723 = vmul.f32 %v540, %v685
    %v724 = vmul.f32 %v542, %v686
    %v725 = vmul.f32 %v544, %v687
    %v726 = vmul.f32 %v546, %v688
    %v727 = vmul.f32 %v548, %v689
    %v728 = vmul.f32 %v550, %v690
    %v729 = vmul.f32 %v552, %v691
    %v730 = vmul.f32 %v554, %v692
    %v731 = vmul.f32 %v556, %v693
    %v732 = vmul.f32 %v558, %v694
    %v733 = vmul.f32 %v560, %v695
    %v734 = vmul.f32 %v562, %v696
    %v735 = vmul.f32 %v564, %v697
    %v736 = vmul.f32 %v566, %v698
    %v737 = vmul.f32 %v568, %v699
    %v738 = vmul.f32 %v570, %v700
    %v739 = vmul.f32 %v572, %v701
    %v740 = vmul.f32 %v574, %v702
    %v741 = vmul.f32 %v576, %v703
    %v742 = vmul.f32 %v578, %v704
    %v743 = vmul.f32 %v580, %v705
    %v744 = vmul.f32 %v582, %v706
    %v745 = vmul.f32 %v584, %v707
    %v746 = vmul.f32 %v586, %v708
    %v747 = vmul.f32 %v588, %v709
    %v748 = vmul.f32 %v590, %v710
    %v749 = vmul.f32 %v592, %v711
    %v750 = vmul.f32 %v594, %v712
    %v751 = vmul.f32 %v596, %v713
    %v752 = vmul.f32 %v598, %v714
    %v753 = vmul.f32 %v600, %v715
    %v754 = vmul.f32 %v602, %v716
    %755 = vst [vmem:[#allocation7] sm:$0xff] %v717
    %756 = vst [vmem:[#allocation7 + $0x8] sm:$0xff] %v718
    %757 = vst [vmem:[#allocation7 + $0x10] sm:$0xff] %v719
    %758 = vst [vmem:[#allocation7 + $0x18] sm:$0xff] %v720
    %759 = vst [vmem:[#allocation7 + $0x20] sm:$0xff] %v721
    %760 = vst [vmem:[#allocation7 + $0x28] sm:$0xff] %v722
    %761 = vst [vmem:[#allocation7 + $0x30] sm:$0xff] %v723
    %762 = vst [vmem:[#allocation7 + $0x38] sm:$0xff] %v724
    %763 = vst [vmem:[#allocation7 + $0x40] sm:$0xff] %v725
    %764 = vst [vmem:[#allocation7 + $0x48] sm:$0xff] %v726
    %765 = vst [vmem:[#allocation7 + $0x50] sm:$0xff] %v727
    %766 = vst [vmem:[#allocation7 + $0x58] sm:$0xff] %v728
    %767 = vst [vmem:[#allocation7 + $0x60] sm:$0xff] %v729
    %768 = vst [vmem:[#allocation7 + $0x68] sm:$0xff] %v730
    %769 = vst [vmem:[#allocation7 + $0x70] sm:$0xff] %v731
    %770 = vst [vmem:[#allocation7 + $0x78] sm:$0xff] %v732
    %771 = vst [vmem:[#allocation7 + $0x80] sm:$0xff] %v733
    %772 = vst [vmem:[#allocation7 + $0x88] sm:$0xff] %v734
    %773 = vst [vmem:[#allocation7 + $0x90] sm:$0xff] %v735
    %774 = vst [vmem:[#allocation7 + $0x98] sm:$0xff] %v736
    %775 = vst [vmem:[#allocation7 + $0xa0] sm:$0xff] %v737
    %776 = vst [vmem:[#allocation7 + $0xa8] sm:$0xff] %v738
    %777 = vst [vmem:[#allocation7 + $0xb0] sm:$0xff] %v739
    %778 = vst [vmem:[#allocation7 + $0xb8] sm:$0xff] %v740
    %779 = vst [vmem:[#allocation7 + $0xc0] sm:$0xff] %v741
    %780 = vst [vmem:[#allocation7 + $0xc8] sm:$0xff] %v742
    %781 = vst [vmem:[#allocation7 + $0xd0] sm:$0xff] %v743
    %782 = vst [vmem:[#allocation7 + $0xd8] sm:$0xff] %v744
    %783 = vst [vmem:[#allocation7 + $0xe0] sm:$0xff] %v745
    %784 = vst [vmem:[#allocation7 + $0xe8] sm:$0xff] %v746
    %785 = vst [vmem:[#allocation7 + $0xf0] sm:$0xff] %v747
    %786 = vst [vmem:[#allocation7 + $0xf8] sm:$0xff] %v748
    %787 = vst [vmem:[#allocation7 + $0x100] sm:$0xff] %v749
    %788 = vst [vmem:[#allocation7 + $0x108] sm:$0xff] %v750
    %789 = vst [vmem:[#allocation7 + $0x110] sm:$0xff] %v751
    %790 = vst [vmem:[#allocation7 + $0x118] sm:$0xff] %v752
    %791 = vst [vmem:[#allocation7 + $0x120] sm:$0xff] %v753
    %792 = vst [vmem:[#allocation7 + $0x128] sm:$0xff] %v754
    // Predicated region
    $region22: #{tpu_custom_call.1} parent=1 // pred_check
      _
    $region23: #{tpu_custom_call.1} parent=1 // pred_check_branch
      %794 = sbr.rel (0) target = $region25
    $region24: #{tpu_custom_call.1} parent=1 // pred_region
      %s796 = ssub.s32 4864, 4864
      %797 = vsyncadd [#allocation4], %s796
      %s798 = sshll.u32 [#allocation7], 4
      %s799 = int_to_ptr.vmem [resolvable:$true] %s798
      %804 = dma.vmem_to_hbm [thread:$0]  %s799, 4864, %s3, [#allocation4], 128, 128, 8
    $region25: #{tpu_custom_call.1} parent=1 // pred_fallthru
      _
    // Predicated region
    $region26: #{tpu_custom_call.1} parent=1 // pred_check
      _
    $region27: #{tpu_custom_call.1} parent=1 // pred_check_branch
      %806 = sbr.rel (0) target = $region29
    $region28: #{tpu_custom_call.1} parent=1 // pred_region
      %807 = dma.done [#allocation4], 4864
    $region29: #{tpu_custom_call.1} parent=1 // pred_fallthru
      _
    %808 = vsyncpa [#allocation3], 1
    %809 = vsyncpa [#allocation6], 1
    %810 = vsyncpa [#allocation4], 1

</llo_original>
